<compile_context>
chip_gen: v7x
topology: tpu7x:2x2x1
jax: 0.10.0
libtpu: 0.0.40
codegen_flags: <defaults>
</compile_context>

<pallas_src>
import functools

import jax
import jax.numpy as jnp
from jax.experimental import pallas as pl
from jax.experimental.pallas import tpu as pltpu


LANE = 128     # TPU lane width
SUBLANE = 8    # f32 sublane group


def _activation_dtype():
    """bf16 activations on v6e/v7x (bf16 VPU/EUP); f32 on v5e and older."""
    try:
        kind = jax.devices()[0].device_kind.lower()
    except Exception:
        return jnp.bfloat16
    if any(tag in kind for tag in ("v2", "v3", "v4", "v5")):
        return jnp.float32
    return jnp.bfloat16


def gated_attn_kernel(x_ref, wab_ref, bab_ref, wc_ref, bc_ref, out_ref, *,
                      d_pad, act_dtype):
    # x tile: (tm, L) in its HBM dtype (f32); cast to bf16 on the VPU (free slot,
    # avoids a separate XLA pad/cast pass over x).
    x = x_ref[...].astype(jnp.bfloat16)
    # Fused Wa|Wb projection: one wide MXU matmul, f32 accumulation.
    z = jnp.dot(x, wab_ref[...], preferred_element_type=jnp.float32) + bab_ref[...]
    a = jnp.tanh(z[:, :d_pad].astype(act_dtype))
    b = jax.nn.sigmoid(z[:, d_pad:].astype(act_dtype))
    gated = (a * b).astype(jnp.bfloat16)
    out = jnp.dot(gated, wc_ref[...], preferred_element_type=jnp.float32) + bc_ref[...]
    # Transpose (tm, 128) -> (128, tm) on the XLU and keep only the first
    # `ncls_sub` sublanes: lane-dense, sublane-compact writeback.
    out_t = out.T
    out_ref[...] = out_t[:out_ref.shape[0], :].astype(out_ref.dtype)


def _choose_tm(n_rows, tm_max):
    """Row tile: multiple of 128 (output lane dim), >= 2 tiles when possible."""
    tm_max = max(LANE, (tm_max // LANE) * LANE)
    if n_rows <= LANE:
        return LANE
    two_way = pl.cdiv(pl.cdiv(n_rows, 2), LANE) * LANE   # ~2 balanced tiles
    return min(tm_max, two_way)


def _vmem_limit_bytes(tm, L, d2, nc_lanes, ncls_sub):
    """Pipeline (double-buffered, counted once) + working-set estimate."""
    bf16, f32 = 2, 4
    dbuf = 2
    pipeline = dbuf * (tm * L * f32                 # x tile
                       + L * d2 * bf16              # fused Wa|Wb
                       + d2 * f32                   # fused ba|bb
                       + (d2 // 2) * nc_lanes * bf16  # Wc (padded lanes)
                       + nc_lanes * f32             # bc
                       + ncls_sub * tm * f32)       # transposed output tile
    work = (tm * L * bf16                  # bf16 copy of x
            + tm * d2 * f32                # z
            + 3 * tm * (d2 // 2) * bf16    # a, b, gated
            + 2 * tm * nc_lanes * f32)     # out + transposed copy
    budget = pipeline + work + (4 << 20)   # headroom
    return int(min(max(budget, 16 << 20), 32 << 20))


def attn_net_gated_forward(x, wa, ba, wb, bb, wc, bc, *, tm=512, act_dtype=None):
    """Pallas implementation of Attn_Net_Gated.forward.  Returns (A, x).

    Weights are stored pre-transposed as (in_features, out_features);
    biases are (1, out_features) rows.
    """
    N, L = x.shape
    D = wa.shape[1]
    n_classes = wc.shape[1]
    assert n_classes <= LANE, "n_classes must fit within one lane group"
    if act_dtype is None:
        act_dtype = _activation_dtype()

    # ---- wrapper-side layout prep (weights only; x goes in untouched) -------
    d_pad = pl.cdiv(D, LANE) * LANE
    pc = d_pad - D
    if pc:
        # Zero padding is exact: tanh(0)*sigmoid(0) = 0 and the matching Wc rows
        # are zero, so padded hidden columns contribute nothing.
        wa = jnp.pad(wa, ((0, 0), (0, pc)))
        ba = jnp.pad(ba, ((0, 0), (0, pc)))
        wb = jnp.pad(wb, ((0, 0), (0, pc)))
        bb = jnp.pad(bb, ((0, 0), (0, pc)))
        wc = jnp.pad(wc, ((0, pc), (0, 0)))

    w_ab = jnp.concatenate([wa, wb], axis=1).astype(jnp.bfloat16)   # (L, 2*d_pad)
    b_ab = jnp.concatenate([ba, bb], axis=1).astype(jnp.float32)    # (1, 2*d_pad)

    nc_lanes = LANE                                    # Wc lane padding (MXU)
    ncls_sub = pl.cdiv(n_classes, SUBLANE) * SUBLANE   # output sublane padding
    wc_p = jnp.pad(wc, ((0, 0), (0, nc_lanes - n_classes))).astype(jnp.bfloat16)
    bc_p = jnp.pad(bc, ((0, 0), (0, nc_lanes - n_classes))).astype(jnp.float32)

    tm = _choose_tm(N, tm)
    grid = (pl.cdiv(N, tm),)

    full = lambda i: (0, 0)    # weights / biases: resident across the grid
    rows = lambda i: (i, 0)    # x: tile over rows
    cols = lambda i: (0, i)    # transposed output: tile over lanes

    A_t = pl.pallas_call(
        functools.partial(gated_attn_kernel, d_pad=d_pad, act_dtype=act_dtype),
        out_shape=jax.ShapeDtypeStruct((ncls_sub, N), jnp.float32),
        grid_spec=pltpu.PrefetchScalarGridSpec(
            num_scalar_prefetch=0,
            grid=grid,
            in_specs=[
                pl.BlockSpec((tm, L), rows),             # x tile (f32)
                pl.BlockSpec((L, 2 * d_pad), full),      # fused Wa|Wb (bf16)
                pl.BlockSpec((1, 2 * d_pad), full),      # fused ba|bb (f32)
                pl.BlockSpec((d_pad, nc_lanes), full),   # Wc padded (bf16)
                pl.BlockSpec((1, nc_lanes), full),       # bc padded (f32)
            ],
            out_specs=pl.BlockSpec((ncls_sub, tm), cols),
        ),
        compiler_params=pltpu.CompilerParams(
            dimension_semantics=("parallel",),
            vmem_limit_bytes=_vmem_limit_bytes(tm, L, 2 * d_pad, nc_lanes,
                                               ncls_sub)),
    )(x, w_ab, b_ab, wc_p, bc_p)

    A = A_t[:n_classes, :].T        # (N, n_classes)
    return A, x


def _init_linear(key, fan_in, fan_out):
    """Deterministic PyTorch-style init: U(-1/sqrt(fan_in), 1/sqrt(fan_in)).
    Weight returned already transposed to (fan_in, fan_out)."""
    kw, kb = jax.random.split(key)
    bound = 1.0 / jnp.sqrt(fan_in)
    w = jax.random.uniform(kw, (fan_in, fan_out), jnp.float32, -bound, bound)
    b = jax.random.uniform(kb, (1, fan_out), jnp.float32, -bound, bound)
    return w, b


if __name__ == "__main__":
    # Small shapes consistent with the module (L, D scaled down, ragged N).
    N, L, D, n_classes = 300, 256, 128, 2

    key = jax.random.PRNGKey(0)
    kx, ka, kb, kc = jax.random.split(key, 4)

    x = jax.random.normal(kx, (N, L), jnp.float32)
    wa, ba = _init_linear(ka, L, D)          # attention_a Linear(L, D)
    wb, bb = _init_linear(kb, L, D)          # attention_b Linear(L, D)
    wc, bc = _init_linear(kc, D, n_classes)  # attention_c Linear(D, n_classes)

    A, x_out = attn_net_gated_forward(x, wa, ba, wb, bb, wc, bc)
    A = jax.block_until_ready(A)
    x_out = jax.block_until_ready(x_out)

    assert A.shape == (N, n_classes)
    assert x_out.shape == (N, L)
    assert jnp.array_equal(x_out, x)

    # Reference matching the kernel's precision policy (bf16 MXU operands with
    # f32 accumulation, activations in the kernel's act_dtype).
    act_dtype = _activation_dtype()
    xb = x.astype(jnp.bfloat16)
    z_a = jnp.dot(xb, wa.astype(jnp.bfloat16),
                  preferred_element_type=jnp.float32) + ba
    z_b = jnp.dot(xb, wb.astype(jnp.bfloat16),
                  preferred_element_type=jnp.float32) + bb
    a_ref = jnp.tanh(z_a.astype(act_dtype))
    b_ref = jax.nn.sigmoid(z_b.astype(act_dtype))
    gated_ref = (a_ref * b_ref).astype(jnp.bfloat16)
    A_ref = jnp.dot(gated_ref, wc.astype(jnp.bfloat16),
                    preferred_element_type=jnp.float32) + bc
    max_err = jnp.max(jnp.abs(A - A_ref))
    assert jnp.allclose(A, A_ref, atol=1e-2, rtol=1e-2), \
        f"max err vs matched-precision reference: {max_err}"

    # Loose sanity check against the full-precision f32 reference.
    A_f32 = (jnp.tanh(x @ wa + ba) * jax.nn.sigmoid(x @ wb + bb)) @ wc + bc
    assert jnp.allclose(A, A_f32, atol=1e-1, rtol=1e-1)

    print("KERNEL_OK")
</pallas_src>

<mosaic_0001>
module attributes {stable_mosaic.version = 11 : i64} {
  func.func @gated_attn_kernel(%arg0: i32, %arg1: memref<256x256xf32, #tpu.memory_space<vmem>>, %arg2: memref<256x256xbf16, #tpu.memory_space<vmem>>, %arg3: memref<1x256xf32, #tpu.memory_space<vmem>>, %arg4: memref<128x128xbf16, #tpu.memory_space<vmem>>, %arg5: memref<1x128xf32, #tpu.memory_space<vmem>>, %arg6: memref<8x256xf32, #tpu.memory_space<vmem>>) attributes {dimension_semantics = [#tpu.dimension_semantics<parallel>], iteration_bounds = array<i64: 2>, scalar_prefetch = 0 : i64, scratch_operands = 0 : i64, tpu.core_type = #tpu.core_type<tc>, window_params = [{transform_indices = @transform_0, window_bounds = array<i64: 256, 256>}, {pipeline_mode = #tpu.pipeline_mode<synchronous>, transform_indices = @transform_1, window_bounds = array<i64: 256, 256>}, {pipeline_mode = #tpu.pipeline_mode<synchronous>, transform_indices = @transform_2, window_bounds = array<i64: 1, 256>}, {pipeline_mode = #tpu.pipeline_mode<synchronous>, transform_indices = @transform_3, window_bounds = array<i64: 128, 128>}, {pipeline_mode = #tpu.pipeline_mode<synchronous>, transform_indices = @transform_4, window_bounds = array<i64: 1, 128>}, {transform_indices = @transform_5, window_bounds = array<i64: 8, 256>}]} {
    %c0 = arith.constant 0 : index
    %c0_0 = arith.constant 0 : index
    %0 = vector.load %arg1[%c0, %c0_0] : memref<256x256xf32, #tpu.memory_space<vmem>>, vector<256x256xf32>
    %1 = arith.truncf %0 : vector<256x256xf32> to vector<256x256xbf16>
    %c0_1 = arith.constant 0 : index
    %c0_2 = arith.constant 0 : index
    %2 = vector.load %arg2[%c0_1, %c0_2] : memref<256x256xbf16, #tpu.memory_space<vmem>>, vector<256x256xbf16>
    %cst = arith.constant dense<0.000000e+00> : vector<256x256xf32>
    %3 = tpu.matmul %1, %2, %cst {dimension_numbers = #tpu.dot_dimension_numbers<[1], [0], [0], [1], [0, 0, 1, 1], [], []>} : vector<256x256xbf16>, vector<256x256xbf16>, vector<256x256xf32> -> vector<256x256xf32>
    %c0_3 = arith.constant 0 : index
    %c0_4 = arith.constant 0 : index
    %4 = vector.load %arg3[%c0_3, %c0_4] : memref<1x256xf32, #tpu.memory_space<vmem>>, vector<1x256xf32>
    %5 = vector.broadcast %4 : vector<1x256xf32> to vector<256x256xf32>
    %6 = arith.addf %3, %5 : vector<256x256xf32>
    %7 = vector.extract_strided_slice %6 {offsets = [0, 0], sizes = [256, 128], strides = [1, 1]} : vector<256x256xf32> to vector<256x128xf32>
    %8 = arith.truncf %7 : vector<256x128xf32> to vector<256x128xbf16>
    %9 = math.tanh %8 : vector<256x128xbf16>
    %10 = vector.extract_strided_slice %6 {offsets = [0, 128], sizes = [256, 128], strides = [1, 1]} : vector<256x256xf32> to vector<256x128xf32>
    %11 = arith.truncf %10 : vector<256x128xf32> to vector<256x128xbf16>
    %12 = arith.negf %11 : vector<256x128xbf16>
    %13 = math.exp %12 : vector<256x128xbf16>
    %cst_5 = arith.constant 1.000000e+00 : bf16
    %14 = vector.broadcast %cst_5 : bf16 to vector<256x128xbf16>
    %15 = arith.addf %14, %13 : vector<256x128xbf16>
    %16 = arith.divf %14, %15 : vector<256x128xbf16>
    %17 = arith.mulf %9, %16 : vector<256x128xbf16>
    %c0_6 = arith.constant 0 : index
    %c0_7 = arith.constant 0 : index
    %18 = vector.load %arg4[%c0_6, %c0_7] : memref<128x128xbf16, #tpu.memory_space<vmem>>, vector<128x128xbf16>
    %cst_8 = arith.constant dense<0.000000e+00> : vector<256x128xf32>
    %19 = tpu.matmul %17, %18, %cst_8 {dimension_numbers = #tpu.dot_dimension_numbers<[1], [0], [0], [1], [0, 0, 1, 1], [], []>} : vector<256x128xbf16>, vector<128x128xbf16>, vector<256x128xf32> -> vector<256x128xf32>
    %c0_9 = arith.constant 0 : index
    %c0_10 = arith.constant 0 : index
    %20 = vector.load %arg5[%c0_9, %c0_10] : memref<1x128xf32, #tpu.memory_space<vmem>>, vector<1x128xf32>
    %21 = vector.broadcast %20 : vector<1x128xf32> to vector<256x128xf32>
    %22 = arith.addf %19, %21 : vector<256x128xf32>
    %23 = tpu.transpose %22, [1, 0] : vector<256x128xf32> -> vector<128x256xf32>
    %24 = vector.extract_strided_slice %23 {offsets = [0, 0], sizes = [8, 256], strides = [1, 1]} : vector<128x256xf32> to vector<8x256xf32>
    %c0_11 = arith.constant 0 : index
    %c0_12 = arith.constant 0 : index
    %25 = vector.load %arg6[%c0_11, %c0_12] : memref<8x256xf32, #tpu.memory_space<vmem>>, vector<8x256xf32>
    tpu.vector_store %arg6[%c0_11, %c0_12], %24 {strides = array<i32>} : memref<8x256xf32, #tpu.memory_space<vmem>>, vector<8x256xf32>,
    return
  }
  func.func @transform_0(%arg0: i32) -> (i32, i32) {
    %c0_i32 = arith.constant 0 : i32
    %c0_i32_0 = arith.constant 0 : i32
    return %arg0, %c0_i32 : i32, i32
  }
  func.func @transform_1(%arg0: i32) -> (i32, i32) {
    %c0_i32 = arith.constant 0 : i32
    %c0_i32_0 = arith.constant 0 : i32
    %c0_i32_1 = arith.constant 0 : i32
    return %c0_i32, %c0_i32_0 : i32, i32
  }
  func.func @transform_2(%arg0: i32) -> (i32, i32) {
    %c0_i32 = arith.constant 0 : i32
    %c0_i32_0 = arith.constant 0 : i32
    %c0_i32_1 = arith.constant 0 : i32
    return %c0_i32, %c0_i32_0 : i32, i32
  }
  func.func @transform_3(%arg0: i32) -> (i32, i32) {
    %c0_i32 = arith.constant 0 : i32
    %c0_i32_0 = arith.constant 0 : i32
    %c0_i32_1 = arith.constant 0 : i32
    return %c0_i32, %c0_i32_0 : i32, i32
  }
  func.func @transform_4(%arg0: i32) -> (i32, i32) {
    %c0_i32 = arith.constant 0 : i32
    %c0_i32_0 = arith.constant 0 : i32
    %c0_i32_1 = arith.constant 0 : i32
    return %c0_i32, %c0_i32_0 : i32, i32
  }
  func.func @transform_5(%arg0: i32) -> (i32, i32) {
    %c0_i32 = arith.constant 0 : i32
    %c0_i32_0 = arith.constant 0 : i32
    return %c0_i32, %arg0 : i32, i32
  }
}

</mosaic_0001>

<llo_original>
// kernel: tpu_custom_call.1
$region0: #{tpu_custom_call.1}
  #allocation0 [shape = 'u32[]', space=smem, size = 0x4, offset = 0x4, fixed_abs, tag = 'smem constant byte address 0x4 - core index']
  #allocation1 [shape = 'u32[144,128]{1,0:T(1,128)}', space=vmem, size = 0x12000, scoped, tag = 'internal scratch']
  %s0 = inlined_call_operand.hbm [shape: f32[300,256], index: 0, kind: input, shape index: {}]
  %s1 = inlined_call_operand.hbm [shape: bf16[256,256], index: 1, kind: input, shape index: {}]
  %s2 = inlined_call_operand.vmem [shape: f32[1,256], index: 2, kind: input, shape index: {}]
  %s3 = inlined_call_operand.hbm [shape: bf16[128,128], index: 3, kind: input, shape index: {}]
  %s4 = inlined_call_operand.vmem [shape: f32[1,128], index: 4, kind: input, shape index: {}]
  %s5 = inlined_call_operand.hbm [shape: f32[8,300], index: 5, kind: output, shape index: {}]
  %s6 = sld [smem:[#allocation0]]
  $region65: #{tpu_custom_call.1} parent=0
    _
  %s8 = ssub.s32 1, %s6
  %s9 = scalar_select 0, %s8, %s6
  $region1: #{tpu_custom_call.1} parent=0
    #allocation2 [shape = 'u8[524288]{0}', space=vmem, size = 0x80000, scoped, tag = 'input window, operand 0']
    #allocation3 [shape = 's32[2]{0}', space=sflag, size = 0x8, scoped, tag = 'scoped memory for tpu_custom_call.1']
    #allocation4 [shape = 's32[2]{0}', space=sflag, size = 0x8, scoped, tag = 'scoped memory for tpu_custom_call.1']
    #allocation5 [shape = 'u8[131072]{0}', space=vmem, size = 0x20000, scoped, tag = 'input window, operand 1, single buffered']
    #allocation6 [shape = 's32[1]{0}', space=sflag, size = 0x4, scoped, tag = 'scoped memory for tpu_custom_call.1']
    #allocation7 [shape = 'u8[32768]{0}', space=vmem, size = 0x8000, scoped, tag = 'input window, operand 3, single buffered']
    #allocation8 [shape = 'u8[16384]{0}', space=vmem, size = 0x4000, scoped, tag = 'output window, operand 0']
    %10 = vsyncpa [#allocation3], 0
    %s11 = scalar_lea.sflag [#allocation3], 1
    %12 = vsyncpa %s11, 0
    %13 = vsyncpa [#allocation6], 0
    %14 = vsyncpa [#allocation4], 0
    %s15 = scalar_lea.sflag [#allocation4], 1
    %16 = vsyncpa %s15, 0
    loop: start=0, step=1, limit=4
    $region2: #{tpu_custom_call.1} parent=1 // loop_pre_header
      _
    $region3: #{tpu_custom_call.1} parent=1 // loop_header
      %s18 = sphi 0, %s22
      %p19 = scmp.ge.s32.totalorder %s18, 4
      %s28 = sphi 0, %s30
      %s31 = sphi 0, %s28
      %s32 = sphi 0, %s31
      %s48 = sphi 0, %s32
      %s52 = sphi 0, %s52
      %s54 = sphi 0, %s52
      %s55 = sphi 0, %s54
      %s69 = sphi 0, %s55
      %s73 = sphi 0, %s73
      %s75 = sphi 0, %s73
      %s76 = sphi 0, %s75
      %s90 = sphi 0, %s76
      %s94 = sphi 0, %s94
      %s96 = sphi 0, %s94
      %s97 = sphi 0, %s96
      %s111 = sphi 0, %s97
      %s115 = sphi 0, %s115
      %s117 = sphi 0, %s115
      %s118 = sphi 0, %s117
      %s132 = sphi 0, %s118
      %s138 = sphi 0, %s140
      %s141 = sphi 0, %s138
      %s142 = sphi 0, %s141
      %s158 = sphi 0, %s142
    $region4: #{tpu_custom_call.1} parent=1 // loop_header_branch
      %21 = sbr.rel (%p19) target = $region8
    $region5: #{tpu_custom_call.1} parent=1 // loop_body
      %s23 = ssub.s32 %s18, 1
      %s24 = ssub.s32 %s18, 2
      %s25 = sadd.s32 %s18, 1
      %s26 = ssub.s32 %s18, %s25
      %p27 = scmp.eq.s32.totalorder %s26, 0
      %s29 = sadd.s32 %s28, 1
      %s30 = scalar_select %p27, %s28, %s29
      %p33 = pneg %p27
      %p34 = scmp.eq.s32.totalorder %s18, 1
      %p35 = por %p33, %p34
      %p36 = scmp.ne.s32.totalorder %s28, %s31
      %p37 = scmp.eq.s32.totalorder %s18, 0
      %p38 = por %p36, %p37
      %p39 = scmp.ne.s32.totalorder %s28, %s31
      %p40 = scmp.eq.s32.totalorder %s23, 1
      %p41 = por %p39, %p40
      %p42 = scmp.ne.s32.totalorder %s31, %s32
      %p43 = scmp.eq.s32.totalorder %s23, 0
      %p44 = por %p42, %p43
      %p45 = scmp.ne.s32.totalorder %s31, %s32
      %p46 = scmp.eq.s32.totalorder %s24, 1
      %p47 = por %p45, %p46
      %p49 = scmp.ne.s32.totalorder %s32, %s48
      %p50 = scmp.eq.s32.totalorder %s24, 0
      %p51 = por %p49, %p50
      %s53 = sadd.s32 %s52, 1
      %p56 = scmp.eq.s32.totalorder %s18, 1
      %p57 = scmp.ne.s32.totalorder %s52, %s54
      %p58 = scmp.eq.s32.totalorder %s18, 0
      %p59 = por %p57, %p58
      %p60 = scmp.ne.s32.totalorder %s52, %s54
      %p61 = scmp.eq.s32.totalorder %s23, 1
      %p62 = por %p60, %p61
      %p63 = scmp.ne.s32.totalorder %s54, %s55
      %p64 = scmp.eq.s32.totalorder %s23, 0
      %p65 = por %p63, %p64
      %p66 = scmp.ne.s32.totalorder %s54, %s55
      %p67 = scmp.eq.s32.totalorder %s24, 1
      %p68 = por %p66, %p67
      %p70 = scmp.ne.s32.totalorder %s55, %s69
      %p71 = scmp.eq.s32.totalorder %s24, 0
      %p72 = por %p70, %p71
      %s74 = sadd.s32 %s73, 1
      %p77 = scmp.eq.s32.totalorder %s18, 1
      %p78 = scmp.ne.s32.totalorder %s73, %s75
      %p79 = scmp.eq.s32.totalorder %s18, 0
      %p80 = por %p78, %p79
      %p81 = scmp.ne.s32.totalorder %s73, %s75
      %p82 = scmp.eq.s32.totalorder %s23, 1
      %p83 = por %p81, %p82
      %p84 = scmp.ne.s32.totalorder %s75, %s76
      %p85 = scmp.eq.s32.totalorder %s23, 0
      %p86 = por %p84, %p85
      %p87 = scmp.ne.s32.totalorder %s75, %s76
      %p88 = scmp.eq.s32.totalorder %s24, 1
      %p89 = por %p87, %p88
      %p91 = scmp.ne.s32.totalorder %s76, %s90
      %p92 = scmp.eq.s32.totalorder %s24, 0
      %p93 = por %p91, %p92
      %s95 = sadd.s32 %s94, 1
      %p98 = scmp.eq.s32.totalorder %s18, 1
      %p99 = scmp.ne.s32.totalorder %s94, %s96
      %p100 = scmp.eq.s32.totalorder %s18, 0
      %p101 = por %p99, %p100
      %p102 = scmp.ne.s32.totalorder %s94, %s96
      %p103 = scmp.eq.s32.totalorder %s23, 1
      %p104 = por %p102, %p103
      %p105 = scmp.ne.s32.totalorder %s96, %s97
      %p106 = scmp.eq.s32.totalorder %s23, 0
      %p107 = por %p105, %p106
      %p108 = scmp.ne.s32.totalorder %s96, %s97
      %p109 = scmp.eq.s32.totalorder %s24, 1
      %p110 = por %p108, %p109
      %p112 = scmp.ne.s32.totalorder %s97, %s111
      %p113 = scmp.eq.s32.totalorder %s24, 0
      %p114 = por %p112, %p113
      %s116 = sadd.s32 %s115, 1
      %p119 = scmp.eq.s32.totalorder %s18, 1
      %p120 = scmp.ne.s32.totalorder %s115, %s117
      %p121 = scmp.eq.s32.totalorder %s18, 0
      %p122 = por %p120, %p121
      %p123 = scmp.ne.s32.totalorder %s115, %s117
      %p124 = scmp.eq.s32.totalorder %s23, 1
      %p125 = por %p123, %p124
      %p126 = scmp.ne.s32.totalorder %s117, %s118
      %p127 = scmp.eq.s32.totalorder %s23, 0
      %p128 = por %p126, %p127
      %p129 = scmp.ne.s32.totalorder %s117, %s118
      %p130 = scmp.eq.s32.totalorder %s24, 1
      %p131 = por %p129, %p130
      %p133 = scmp.ne.s32.totalorder %s118, %s132
      %p134 = scmp.eq.s32.totalorder %s24, 0
      %p135 = por %p133, %p134
      %s136 = ssub.s32 %s18, %s25
      %p137 = scmp.eq.s32.totalorder %s136, 0
      %s139 = sadd.s32 %s138, 1
      %s140 = scalar_select %p137, %s138, %s139
      %p143 = pneg %p137
      %p144 = scmp.eq.s32.totalorder %s18, 1
      %p145 = por %p143, %p144
      %p146 = scmp.ne.s32.totalorder %s138, %s141
      %p147 = scmp.eq.s32.totalorder %s18, 0
      %p148 = por %p146, %p147
      %p149 = scmp.ne.s32.totalorder %s138, %s141
      %p150 = scmp.eq.s32.totalorder %s23, 1
      %p151 = por %p149, %p150
      %p152 = scmp.ne.s32.totalorder %s141, %s142
      %p153 = scmp.eq.s32.totalorder %s23, 0
      %p154 = por %p152, %p153
      %p155 = scmp.ne.s32.totalorder %s141, %s142
      %p156 = scmp.eq.s32.totalorder %s24, 1
      %p157 = por %p155, %p156
      %p159 = scmp.ne.s32.totalorder %s142, %s158
      %p160 = scmp.eq.s32.totalorder %s24, 0
      %p161 = por %p159, %p160
      %p162 = scmp.le.s32.totalorder 1, %s18
      %p163 = scmp.lt.s32.totalorder %s18, 3
      %p164 = pnand %p162, %p163
      %p165 = pneg %p164
      // Predicated region
      $region9: #{tpu_custom_call.1} parent=5 // pred_check
        _
      $region10: #{tpu_custom_call.1} parent=5 // pred_check_branch
        %167 = sbr.rel (%p164) target = $region12
      $region11: #{tpu_custom_call.1} parent=5 // pred_region
        %s168 = ssub.s32 %s18, 1
        // Predicated region
        $region13: #{tpu_custom_call.1} parent=11 // pred_check
          %p169 = pneg %p65
        $region14: #{tpu_custom_call.1} parent=11 // pred_check_branch
          %171 = sbr.rel (%p169) target = $region16
        $region15: #{tpu_custom_call.1} parent=11 // pred_region
          %s173 = ssub.s32 4096, 4096
          %174 = vsyncadd [#allocation6], %s173
          %s175 = sshll.u32 [#allocation5], 4
          %s176 = int_to_ptr.vmem [resolvable:$true] %s175
          %181 = dma.hbm_to_vmem [thread:$0]  %s1, 4096, %s176, [#allocation6], 128, 128, 8
        $region16: #{tpu_custom_call.1} parent=11 // pred_fallthru
          _
        // Predicated region
        $region17: #{tpu_custom_call.1} parent=11 // pred_check
          %p182 = pneg %p86
        $region18: #{tpu_custom_call.1} parent=11 // pred_check_branch
          %184 = sbr.rel (%p182) target = $region20
        $region19: #{tpu_custom_call.1} parent=11 // pred_region
          _
        $region20: #{tpu_custom_call.1} parent=11 // pred_fallthru
          _
        // Predicated region
        $region21: #{tpu_custom_call.1} parent=11 // pred_check
          %p185 = pneg %p107
        $region22: #{tpu_custom_call.1} parent=11 // pred_check_branch
          %187 = sbr.rel (%p185) target = $region24
        $region23: #{tpu_custom_call.1} parent=11 // pred_region
          %s189 = ssub.s32 1024, 1024
          %190 = vsyncadd [#allocation6], %s189
          %s191 = sshll.u32 [#allocation7], 4
          %s192 = int_to_ptr.vmem [resolvable:$true] %s191
          %197 = dma.hbm_to_vmem [thread:$0]  %s3, 1024, %s192, [#allocation6], 64, 64, 4
        $region24: #{tpu_custom_call.1} parent=11 // pred_fallthru
          _
        // Predicated region
        $region25: #{tpu_custom_call.1} parent=11 // pred_check
          %p198 = pneg %p128
        $region26: #{tpu_custom_call.1} parent=11 // pred_check_branch
          %200 = sbr.rel (%p198) target = $region28
        $region27: #{tpu_custom_call.1} parent=11 // pred_region
          _
        $region28: #{tpu_custom_call.1} parent=11 // pred_fallthru
          _
      $region12: #{tpu_custom_call.1} parent=5 // pred_fallthru
        _
      %p201 = scmp.lt.s32.totalorder %s18, 2
      // Predicated region
      $region29: #{tpu_custom_call.1} parent=5 // pred_check
        %p202 = pneg %p201
      $region30: #{tpu_custom_call.1} parent=5 // pred_check_branch
        %204 = sbr.rel (%p202) target = $region32
      $region31: #{tpu_custom_call.1} parent=5 // pred_region
        // Predicated region
        $region33: #{tpu_custom_call.1} parent=31 // pred_check
          %p205 = pneg %p38
        $region34: #{tpu_custom_call.1} parent=31 // pred_check_branch
          %207 = sbr.rel (%p205) target = $region36
        $region35: #{tpu_custom_call.1} parent=31 // pred_region
          %s208 = sand.u32 %s28, 1
          %s209 = scalar_lea.sflag [#allocation3], %s208
          %s210 = sand.u32 %s28, 1
          %s211 = smul.addr %s210, 512
          %s212 = scalar_lea.vmem [#allocation2], %s211
          %s213 = smul.u32 32, %s18
          %s214 = ssub.s32 38, %s213
          %p215 = scmp.lt.s32.totalorder %s214, 32
          %s216 = scalar_select %p215, %s214, 32
          %s217 = smul.u32 128, %s216
          %s218 = smul.u32 %s217, 2
          %s220 = ssub.s32 8192, %s218
          %221 = vsyncadd %s209, %s220
          %p222 = scmp.ne.s32.totalorder 0, %s218
          %s223 = smul.addr %s213, 2
          %s224 = smul.addr %s223, 128
          %s225 = scalar_lea.hbm %s0, %s224
          %s226 = smul.u32 16, %s216
          %s227 = sshll.u32 %s212, 4
          %s228 = int_to_ptr.vmem [resolvable:$true] %s227
          %s229 = sshll.u32 %s226, 4
          %233 = dma.hbm_to_vmem [thread:$0]  (%p222), %s225, %s229, %s228, %s209, 256, 256, 16
        $region36: #{tpu_custom_call.1} parent=31 // pred_fallthru
          _
      $region32: #{tpu_custom_call.1} parent=5 // pred_fallthru
        _
      %p234 = scmp.le.s32.totalorder 1, %s18
      %p235 = scmp.lt.s32.totalorder %s18, 3
      %p236 = pnand %p234, %p235
      %p237 = pneg %p236
      // Predicated region
      $region37: #{tpu_custom_call.1} parent=5 // pred_check
        _
      $region38: #{tpu_custom_call.1} parent=5 // pred_check_branch
        %239 = sbr.rel (%p236) target = $region40
      $region39: #{tpu_custom_call.1} parent=5 // pred_region
        %s240 = ssub.s32 %s18, 1
        %s241 = sand.u32 %s31, 1
        %s242 = scalar_lea.sflag [#allocation3], %s241
        %s243 = sand.u32 %s31, 1
        %s244 = smul.addr %s243, 512
        %s245 = scalar_lea.vmem [#allocation2], %s244
        // Predicated region
        $region41: #{tpu_custom_call.1} parent=39 // pred_check
          %p246 = pneg %p44
        $region42: #{tpu_custom_call.1} parent=39 // pred_check_branch
          %248 = sbr.rel (%p246) target = $region44
        $region43: #{tpu_custom_call.1} parent=39 // pred_region
          %249 = dma.done %s242, 8192
        $region44: #{tpu_custom_call.1} parent=39 // pred_fallthru
          _
        // Predicated region
        $region45: #{tpu_custom_call.1} parent=39 // pred_check
          %p250 = pneg %p65
        $region46: #{tpu_custom_call.1} parent=39 // pred_check_branch
          %252 = sbr.rel (%p250) target = $region48
        $region47: #{tpu_custom_call.1} parent=39 // pred_region
          %253 = dma.done [#allocation6], 4096
        $region48: #{tpu_custom_call.1} parent=39 // pred_fallthru
          _
        // Predicated region
        $region49: #{tpu_custom_call.1} parent=39 // pred_check
          %p254 = pneg %p107
        $region50: #{tpu_custom_call.1} parent=39 // pred_check_branch
          %256 = sbr.rel (%p254) target = $region52
        $region51: #{tpu_custom_call.1} parent=39 // pred_region
          %257 = dma.done [#allocation6], 1024
        $region52: #{tpu_custom_call.1} parent=39 // pred_fallthru
          _
        %s258 = sand.u32 %s31, 1
        %s259 = scalar_lea.sflag [#allocation3], %s258
        %s260 = sand.u32 %s31, 1
        %s261 = smul.addr %s260, 512
        %s262 = scalar_lea.vmem [#allocation2], %s261
        %p263 = pneg %p44
        %p264 = pneg %p41
        %p265 = pneg %p65
        %p266 = pneg %p62
        %p267 = pneg %p86
        %p268 = pneg %p83
        %p269 = pneg %p107
        %p270 = pneg %p104
        %p271 = pneg %p128
        %p272 = pneg %p125
        %p273 = pneg %p154
        %p274 = pneg %p151
        %s275 = sand.u32 %s141, 1
        %s276 = scalar_lea.sflag [#allocation4], %s275
        %s277 = sand.u32 %s141, 1
        %s278 = smul.addr %s277, 16
        %s279 = scalar_lea.vmem [#allocation8], %s278
        %s280 = smul.u32 32, %s23
        %s281 = ssub.s32 38, %s280
        %p282 = scmp.lt.s32.totalorder %s281, 32
        %s283 = scalar_select %p282, %s281, 32
        %s284 = smul.u32 128, %s283
        %s285 = smul.u32 %s284, 2
        %s286 = smul.u32 2, %s23
        %s287 = ssub.s32 3, %s286
        %p288 = scmp.lt.s32.totalorder %s287, 2
        %s289 = scalar_select %p288, %s287, 2
        %s290 = smul.u32 128, %s289
        %v293 = vld [vmem:[%s245] sm:$0xff]
        %v294 = vld [vmem:[%s245 + $0x8] sm:$0xff]
        %v295 = vld [vmem:[%s245 + $0x10] sm:$0xff]
        %v296 = vld [vmem:[%s245 + $0x18] sm:$0xff]
        %v297 = vld [vmem:[%s245 + $0x20] sm:$0xff]
        %v298 = vld [vmem:[%s245 + $0x28] sm:$0xff]
        %v299 = vld [vmem:[%s245 + $0x30] sm:$0xff]
        %v300 = vld [vmem:[%s245 + $0x38] sm:$0xff]
        %v301 = vld [vmem:[%s245 + $0x40] sm:$0xff]
        %v302 = vld [vmem:[%s245 + $0x48] sm:$0xff]
        %v303 = vld [vmem:[%s245 + $0x50] sm:$0xff]
        %v304 = vld [vmem:[%s245 + $0x58] sm:$0xff]
        %v305 = vld [vmem:[%s245 + $0x60] sm:$0xff]
        %v306 = vld [vmem:[%s245 + $0x68] sm:$0xff]
        %v307 = vld [vmem:[%s245 + $0x70] sm:$0xff]
        %v308 = vld [vmem:[%s245 + $0x78] sm:$0xff]
        %v309 = vld [vmem:[%s245 + $0x80] sm:$0xff]
        %v310 = vld [vmem:[%s245 + $0x88] sm:$0xff]
        %v311 = vld [vmem:[%s245 + $0x90] sm:$0xff]
        %v312 = vld [vmem:[%s245 + $0x98] sm:$0xff]
        %v313 = vld [vmem:[%s245 + $0xa0] sm:$0xff]
        %v314 = vld [vmem:[%s245 + $0xa8] sm:$0xff]
        %v315 = vld [vmem:[%s245 + $0xb0] sm:$0xff]
        %v316 = vld [vmem:[%s245 + $0xb8] sm:$0xff]
        %v317 = vld [vmem:[%s245 + $0xc0] sm:$0xff]
        %v318 = vld [vmem:[%s245 + $0xc8] sm:$0xff]
        %v319 = vld [vmem:[%s245 + $0xd0] sm:$0xff]
        %v320 = vld [vmem:[%s245 + $0xd8] sm:$0xff]
        %v321 = vld [vmem:[%s245 + $0xe0] sm:$0xff]
        %v322 = vld [vmem:[%s245 + $0xe8] sm:$0xff]
        %v323 = vld [vmem:[%s245 + $0xf0] sm:$0xff]
        %v324 = vld [vmem:[%s245 + $0xf8] sm:$0xff]
        %v325 = vld [vmem:[%s245 + $0x100] sm:$0xff]
        %v326 = vld [vmem:[%s245 + $0x108] sm:$0xff]
        %v327 = vld [vmem:[%s245 + $0x110] sm:$0xff]
        %v328 = vld [vmem:[%s245 + $0x118] sm:$0xff]
        %v329 = vld [vmem:[%s245 + $0x120] sm:$0xff]
        %v330 = vld [vmem:[%s245 + $0x128] sm:$0xff]
        %v331 = vld [vmem:[%s245 + $0x130] sm:$0xff]
        %v332 = vld [vmem:[%s245 + $0x138] sm:$0xff]
        %v333 = vld [vmem:[%s245 + $0x140] sm:$0xff]
        %v334 = vld [vmem:[%s245 + $0x148] sm:$0xff]
        %v335 = vld [vmem:[%s245 + $0x150] sm:$0xff]
        %v336 = vld [vmem:[%s245 + $0x158] sm:$0xff]
        %v337 = vld [vmem:[%s245 + $0x160] sm:$0xff]
        %v338 = vld [vmem:[%s245 + $0x168] sm:$0xff]
        %v339 = vld [vmem:[%s245 + $0x170] sm:$0xff]
        %v340 = vld [vmem:[%s245 + $0x178] sm:$0xff]
        %v341 = vld [vmem:[%s245 + $0x180] sm:$0xff]
        %v342 = vld [vmem:[%s245 + $0x188] sm:$0xff]
        %v343 = vld [vmem:[%s245 + $0x190] sm:$0xff]
        %v344 = vld [vmem:[%s245 + $0x198] sm:$0xff]
        %v345 = vld [vmem:[%s245 + $0x1a0] sm:$0xff]
        %v346 = vld [vmem:[%s245 + $0x1a8] sm:$0xff]
        %v347 = vld [vmem:[%s245 + $0x1b0] sm:$0xff]
        %v348 = vld [vmem:[%s245 + $0x1b8] sm:$0xff]
        %v349 = vld [vmem:[%s245 + $0x1c0] sm:$0xff]
        %v350 = vld [vmem:[%s245 + $0x1c8] sm:$0xff]
        %v351 = vld [vmem:[%s245 + $0x1d0] sm:$0xff]
        %v352 = vld [vmem:[%s245 + $0x1d8] sm:$0xff]
        %v353 = vld [vmem:[%s245 + $0x1e0] sm:$0xff]
        %v354 = vld [vmem:[%s245 + $0x1e8] sm:$0xff]
        %v355 = vld [vmem:[%s245 + $0x1f0] sm:$0xff]
        %v356 = vld [vmem:[%s245 + $0x1f8] sm:$0xff]
        %v357 = vpack.c.bf16 %v295, %v293
        %v358 = vpack.c.bf16 %v296, %v294
        %v359 = vpack.c.bf16 %v299, %v297
        %v360 = vpack.c.bf16 %v300, %v298
        %v361 = vpack.c.bf16 %v303, %v301
        %v362 = vpack.c.bf16 %v304, %v302
        %v363 = vpack.c.bf16 %v307, %v305
        %v364 = vpack.c.bf16 %v308, %v306
        %v365 = vpack.c.bf16 %v311, %v309
        %v366 = vpack.c.bf16 %v312, %v310
        %v367 = vpack.c.bf16 %v315, %v313
        %v368 = vpack.c.bf16 %v316, %v314
        %v369 = vpack.c.bf16 %v319, %v317
        %v370 = vpack.c.bf16 %v320, %v318
        %v371 = vpack.c.bf16 %v323, %v321
        %v372 = vpack.c.bf16 %v324, %v322
        %v373 = vpack.c.bf16 %v327, %v325
        %v374 = vpack.c.bf16 %v328, %v326
        %v375 = vpack.c.bf16 %v331, %v329
        %v376 = vpack.c.bf16 %v332, %v330
        %v377 = vpack.c.bf16 %v335, %v333
        %v378 = vpack.c.bf16 %v336, %v334
        %v379 = vpack.c.bf16 %v339, %v337
        %v380 = vpack.c.bf16 %v340, %v338
        %v381 = vpack.c.bf16 %v343, %v341
        %v382 = vpack.c.bf16 %v344, %v342
        %v383 = vpack.c.bf16 %v347, %v345
        %v384 = vpack.c.bf16 %v348, %v346
        %v385 = vpack.c.bf16 %v351, %v349
        %v386 = vpack.c.bf16 %v352, %v350
        %v387 = vpack.c.bf16 %v355, %v353
        %v388 = vpack.c.bf16 %v356, %v354
        %v389 = vld [vmem:[#allocation5] sm:$0xff]
        %v390 = vld [vmem:[#allocation5 + $0x8] sm:$0xff]
        %v391 = vld [vmem:[#allocation5 + $0x10] sm:$0xff]
        %v392 = vld [vmem:[#allocation5 + $0x18] sm:$0xff]
        %v393 = vld [vmem:[#allocation5 + $0x20] sm:$0xff]
        %v394 = vld [vmem:[#allocation5 + $0x28] sm:$0xff]
        %v395 = vld [vmem:[#allocation5 + $0x30] sm:$0xff]
        %v396 = vld [vmem:[#allocation5 + $0x38] sm:$0xff]
        %v397 = vld [vmem:[#allocation5 + $0x40] sm:$0xff]
        %v398 = vld [vmem:[#allocation5 + $0x48] sm:$0xff]
        %v399 = vld [vmem:[#allocation5 + $0x50] sm:$0xff]
        %v400 = vld [vmem:[#allocation5 + $0x58] sm:$0xff]
        %v401 = vld [vmem:[#allocation5 + $0x60] sm:$0xff]
        %v402 = vld [vmem:[#allocation5 + $0x68] sm:$0xff]
        %v403 = vld [vmem:[#allocation5 + $0x70] sm:$0xff]
        %v404 = vld [vmem:[#allocation5 + $0x78] sm:$0xff]
        %v405 = vld [vmem:[#allocation5 + $0x80] sm:$0xff]
        %v406 = vld [vmem:[#allocation5 + $0x88] sm:$0xff]
        %v407 = vld [vmem:[#allocation5 + $0x90] sm:$0xff]
        %v408 = vld [vmem:[#allocation5 + $0x98] sm:$0xff]
        %v409 = vld [vmem:[#allocation5 + $0xa0] sm:$0xff]
        %v410 = vld [vmem:[#allocation5 + $0xa8] sm:$0xff]
        %v411 = vld [vmem:[#allocation5 + $0xb0] sm:$0xff]
        %v412 = vld [vmem:[#allocation5 + $0xb8] sm:$0xff]
        %v413 = vld [vmem:[#allocation5 + $0xc0] sm:$0xff]
        %v414 = vld [vmem:[#allocation5 + $0xc8] sm:$0xff]
        %v415 = vld [vmem:[#allocation5 + $0xd0] sm:$0xff]
        %v416 = vld [vmem:[#allocation5 + $0xd8] sm:$0xff]
        %v417 = vld [vmem:[#allocation5 + $0xe0] sm:$0xff]
        %v418 = vld [vmem:[#allocation5 + $0xe8] sm:$0xff]
        %v419 = vld [vmem:[#allocation5 + $0xf0] sm:$0xff]
        %v420 = vld [vmem:[#allocation5 + $0xf8] sm:$0xff]
        %v421 = vld [vmem:[%s2] sm:$0x3]
        %v423 = vlaneseq
        %v424 = vshrl.u32 %v423, 7
        %v425 = vsub.s32 0, %v424
        %v426 = vrot.slane %v421, %v425
        %v427 = vlaneseq
        %v428 = vshrl.u32 %v427, 7
        %v429 = vsub.s32 1, %v428
        %v430 = vrot.slane %v421, %v429
        %v465 = vunpack.c.l.b16 %v389
        %v466 = vunpack.c.h.b16 %v389
        %v467 = vunpack.c.l.b16 %v390
        %v468 = vunpack.c.h.b16 %v390
        %v469 = vunpack.c.l.b16 %v391
        %v470 = vunpack.c.h.b16 %v391
        %v471 = vunpack.c.l.b16 %v392
        %v472 = vunpack.c.h.b16 %v392
        %v473 = vunpack.c.l.b16 %v393
        %v474 = vunpack.c.h.b16 %v393
        %v475 = vunpack.c.l.b16 %v394
        %v476 = vunpack.c.h.b16 %v394
        %v477 = vunpack.c.l.b16 %v395
        %v478 = vunpack.c.h.b16 %v395
        %v479 = vunpack.c.l.b16 %v396
        %v480 = vunpack.c.h.b16 %v396
        %v481 = vunpack.c.l.b16 %v397
        %v482 = vunpack.c.h.b16 %v397
        %v483 = vunpack.c.l.b16 %v398
        %v484 = vunpack.c.h.b16 %v398
        %v485 = vunpack.c.l.b16 %v399
        %v486 = vunpack.c.h.b16 %v399
        %v487 = vunpack.c.l.b16 %v400
        %v488 = vunpack.c.h.b16 %v400
        %v489 = vunpack.c.l.b16 %v401
        %v490 = vunpack.c.h.b16 %v401
        %v491 = vunpack.c.l.b16 %v402
        %v492 = vunpack.c.h.b16 %v402
        %v493 = vunpack.c.l.b16 %v403
        %v494 = vunpack.c.h.b16 %v403
        %v495 = vunpack.c.l.b16 %v404
        %v496 = vunpack.c.h.b16 %v404
        %v497 = vunpack.c.l.b16 %v405
        %v498 = vunpack.c.h.b16 %v405
        %v499 = vunpack.c.l.b16 %v406
        %v500 = vunpack.c.h.b16 %v406
        %v501 = vunpack.c.l.b16 %v407
        %v502 = vunpack.c.h.b16 %v407
        %v503 = vunpack.c.l.b16 %v408
        %v504 = vunpack.c.h.b16 %v408
        %v505 = vunpack.c.l.b16 %v409
        %v506 = vunpack.c.h.b16 %v409
        %v507 = vunpack.c.l.b16 %v410
        %v508 = vunpack.c.h.b16 %v410
        %v509 = vunpack.c.l.b16 %v411
        %v510 = vunpack.c.h.b16 %v411
        %v511 = vunpack.c.l.b16 %v412
        %v512 = vunpack.c.h.b16 %v412
        %v513 = vunpack.c.l.b16 %v413
        %v514 = vunpack.c.h.b16 %v413
        %v515 = vunpack.c.l.b16 %v414
        %v516 = vunpack.c.h.b16 %v414
        %v517 = vunpack.c.l.b16 %v415
        %v518 = vunpack.c.h.b16 %v415
        %v519 = vunpack.c.l.b16 %v416
        %v520 = vunpack.c.h.b16 %v416
        %v521 = vunpack.c.l.b16 %v417
        %v522 = vunpack.c.h.b16 %v417
        %v523 = vunpack.c.l.b16 %v418
        %v524 = vunpack.c.h.b16 %v418
        %v525 = vunpack.c.l.b16 %v419
        %v526 = vunpack.c.h.b16 %v419
        %v527 = vunpack.c.l.b16 %v420
        %v528 = vunpack.c.h.b16 %v420
        %v529 = vpack.c.b16 %v467, %v465
        %v530 = vpack.c.b16 %v468, %v466
        %v531 = vpack.c.b16 %v471, %v469
        %v532 = vpack.c.b16 %v472, %v470
        %v533 = vpack.c.b16 %v475, %v473
        %v534 = vpack.c.b16 %v476, %v474
        %v535 = vpack.c.b16 %v479, %v477
        %v536 = vpack.c.b16 %v480, %v478
        %v537 = vpack.c.b16 %v483, %v481
        %v538 = vpack.c.b16 %v484, %v482
        %v539 = vpack.c.b16 %v487, %v485
        %v540 = vpack.c.b16 %v488, %v486
        %v541 = vpack.c.b16 %v491, %v489
        %v542 = vpack.c.b16 %v492, %v490
        %v543 = vpack.c.b16 %v495, %v493
        %v544 = vpack.c.b16 %v496, %v494
        %v545 = vpack.c.b16 %v499, %v497
        %v546 = vpack.c.b16 %v500, %v498
        %v547 = vpack.c.b16 %v503, %v501
        %v548 = vpack.c.b16 %v504, %v502
        %v549 = vpack.c.b16 %v507, %v505
        %v550 = vpack.c.b16 %v508, %v506
        %v551 = vpack.c.b16 %v511, %v509
        %v552 = vpack.c.b16 %v512, %v510
        %v553 = vpack.c.b16 %v515, %v513
        %v554 = vpack.c.b16 %v516, %v514
        %v555 = vpack.c.b16 %v519, %v517
        %v556 = vpack.c.b16 %v520, %v518
        %v557 = vpack.c.b16 %v523, %v521
        %v558 = vpack.c.b16 %v524, %v522
        %v559 = vpack.c.b16 %v527, %v525
        %v560 = vpack.c.b16 %v528, %v526
        %593 = vmatprep.subr.bf16.mxu0 %v530
        %594 = vmatpush1.bf16.msra.mxu0 %v529
        %595 = vmatprep.subr.bf16.mxu0 %v532
        %596 = vmatpush1.bf16.msra.mxu0 %v531
        %597 = vmatprep.subr.bf16.mxu0 %v534
        %598 = vmatpush1.bf16.msra.mxu0 %v533
        %599 = vmatprep.subr.bf16.mxu0 %v536
        %600 = vmatpush1.bf16.msra.mxu0 %v535
        %601 = vmatprep.subr.bf16.mxu0 %v538
        %602 = vmatpush1.bf16.msra.mxu0 %v537
        %603 = vmatprep.subr.bf16.mxu0 %v540
        %604 = vmatpush1.bf16.msra.mxu0 %v539
        %605 = vmatprep.subr.bf16.mxu0 %v542
        %606 = vmatpush1.bf16.msra.mxu0 %v541
        %607 = vmatprep.subr.bf16.mxu0 %v544
        %608 = vmatpush1.bf16.msra.mxu0 %v543
        %609 = vmatprep.subr.bf16.mxu0 %v546
        %610 = vmatpush1.bf16.msra.mxu0 %v545
        %611 = vmatprep.subr.bf16.mxu0 %v548
        %612 = vmatpush1.bf16.msra.mxu0 %v547
        %613 = vmatprep.subr.bf16.mxu0 %v550
        %614 = vmatpush1.bf16.msra.mxu0 %v549
        %615 = vmatprep.subr.bf16.mxu0 %v552
        %616 = vmatpush1.bf16.msra.mxu0 %v551
        %617 = vmatprep.subr.bf16.mxu0 %v554
        %618 = vmatpush1.bf16.msra.mxu0 %v553
        %619 = vmatprep.subr.bf16.mxu0 %v556
        %620 = vmatpush1.bf16.msra.mxu0 %v555
        %621 = vmatprep.subr.bf16.mxu0 %v558
        %622 = vmatpush1.bf16.msra.mxu0 %v557
        %623 = vmatprep.subr.bf16.mxu0 %v560
        %624 = vmatpush1.bf16.msra.mxu0 %v559
        %625 = vmatprep.mubr.bf16.mxu0 %v358
        %626 = vmatmul.mubr.bf16.gmra.mrb[0].mxu0 %v357
        %v627 = vpop.f32.mrb[0].mxu0
        %v628 = vadd.f32 %v426, %v627
        %v629 = vpop.f32.mrb[0].mxu0
        %v630 = vadd.f32 %v430, %v629
        %v631 = vpop.f32.mrb[0].mxu0
        %v632 = vadd.f32 %v426, %v631
        %v633 = vpop.f32.mrb[0].mxu0
        %v634 = vadd.f32 %v430, %v633
        %635 = vmatprep.mubr.bf16.mxu0 %v360
        %636 = vmatmul.mubr.bf16.gmra.mrb[0].mxu0 %v359
        %v637 = vpop.f32.mrb[0].mxu0
        %v638 = vadd.f32 %v426, %v637
        %v639 = vpop.f32.mrb[0].mxu0
        %v640 = vadd.f32 %v430, %v639
        %v641 = vpop.f32.mrb[0].mxu0
        %v642 = vadd.f32 %v426, %v641
        %v643 = vpop.f32.mrb[0].mxu0
        %v644 = vadd.f32 %v430, %v643
        %645 = vmatprep.mubr.bf16.mxu0 %v362
        %646 = vmatmul.mubr.bf16.gmra.mrb[0].mxu0 %v361
        %v647 = vpop.f32.mrb[0].mxu0
        %v648 = vadd.f32 %v426, %v647
        %v649 = vpop.f32.mrb[0].mxu0
        %v650 = vadd.f32 %v430, %v649
        %v651 = vpop.f32.mrb[0].mxu0
        %v652 = vadd.f32 %v426, %v651
        %v653 = vpop.f32.mrb[0].mxu0
        %v654 = vadd.f32 %v430, %v653
        %655 = vmatprep.mubr.bf16.mxu0 %v364
        %656 = vmatmul.mubr.bf16.gmra.mrb[0].mxu0 %v363
        %v657 = vpop.f32.mrb[0].mxu0
        %v658 = vadd.f32 %v426, %v657
        %v659 = vpop.f32.mrb[0].mxu0
        %v660 = vadd.f32 %v430, %v659
        %v661 = vpop.f32.mrb[0].mxu0
        %v662 = vadd.f32 %v426, %v661
        %v663 = vpop.f32.mrb[0].mxu0
        %v664 = vadd.f32 %v430, %v663
        %665 = vmatprep.mubr.bf16.mxu0 %v366
        %666 = vmatmul.mubr.bf16.gmra.mrb[0].mxu0 %v365
        %v667 = vpop.f32.mrb[0].mxu0
        %v668 = vadd.f32 %v426, %v667
        %v669 = vpop.f32.mrb[0].mxu0
        %v670 = vadd.f32 %v430, %v669
        %v671 = vpop.f32.mrb[0].mxu0
        %v672 = vadd.f32 %v426, %v671
        %v673 = vpop.f32.mrb[0].mxu0
        %v674 = vadd.f32 %v430, %v673
        %675 = vmatprep.mubr.bf16.mxu0 %v368
        %676 = vmatmul.mubr.bf16.gmra.mrb[0].mxu0 %v367
        %v677 = vpop.f32.mrb[0].mxu0
        %v678 = vadd.f32 %v426, %v677
        %v679 = vpop.f32.mrb[0].mxu0
        %v680 = vadd.f32 %v430, %v679
        %v681 = vpop.f32.mrb[0].mxu0
        %v682 = vadd.f32 %v426, %v681
        %v683 = vpop.f32.mrb[0].mxu0
        %v684 = vadd.f32 %v430, %v683
        %685 = vmatprep.mubr.bf16.mxu0 %v370
        %686 = vmatmul.mubr.bf16.gmra.mrb[0].mxu0 %v369
        %v687 = vpop.f32.mrb[0].mxu0
        %v688 = vadd.f32 %v426, %v687
        %v689 = vpop.f32.mrb[0].mxu0
        %v690 = vadd.f32 %v430, %v689
        %v691 = vpop.f32.mrb[0].mxu0
        %v692 = vadd.f32 %v426, %v691
        %v693 = vpop.f32.mrb[0].mxu0
        %v694 = vadd.f32 %v430, %v693
        %695 = vmatprep.mubr.bf16.mxu0 %v372
        %696 = vmatmul.mubr.bf16.gmra.mrb[0].mxu0 %v371
        %v697 = vpop.f32.mrb[0].mxu0
        %v698 = vadd.f32 %v426, %v697
        %v699 = vpop.f32.mrb[0].mxu0
        %v700 = vadd.f32 %v430, %v699
        %v701 = vpop.f32.mrb[0].mxu0
        %v702 = vadd.f32 %v426, %v701
        %v703 = vpop.f32.mrb[0].mxu0
        %v704 = vadd.f32 %v430, %v703
        %705 = vmatprep.mubr.bf16.mxu0 %v374
        %706 = vmatmul.mubr.bf16.gmra.mrb[0].mxu0 %v373
        %v707 = vpop.f32.mrb[0].mxu0
        %v708 = vadd.f32 %v426, %v707
        %v709 = vpop.f32.mrb[0].mxu0
        %v710 = vadd.f32 %v430, %v709
        %v711 = vpop.f32.mrb[0].mxu0
        %v712 = vadd.f32 %v426, %v711
        %v713 = vpop.f32.mrb[0].mxu0
        %v714 = vadd.f32 %v430, %v713
        %715 = vmatprep.mubr.bf16.mxu0 %v376
        %716 = vmatmul.mubr.bf16.gmra.mrb[0].mxu0 %v375
        %v717 = vpop.f32.mrb[0].mxu0
        %v718 = vadd.f32 %v426, %v717
        %v719 = vpop.f32.mrb[0].mxu0
        %v720 = vadd.f32 %v430, %v719
        %v721 = vpop.f32.mrb[0].mxu0
        %v722 = vadd.f32 %v426, %v721
        %v723 = vpop.f32.mrb[0].mxu0
        %v724 = vadd.f32 %v430, %v723
        %725 = vmatprep.mubr.bf16.mxu0 %v378
        %726 = vmatmul.mubr.bf16.gmra.mrb[0].mxu0 %v377
        %v727 = vpop.f32.mrb[0].mxu0
        %v728 = vadd.f32 %v426, %v727
        %v729 = vpop.f32.mrb[0].mxu0
        %v730 = vadd.f32 %v430, %v729
        %v731 = vpop.f32.mrb[0].mxu0
        %v732 = vadd.f32 %v426, %v731
        %v733 = vpop.f32.mrb[0].mxu0
        %v734 = vadd.f32 %v430, %v733
        %735 = vmatprep.mubr.bf16.mxu0 %v380
        %736 = vmatmul.mubr.bf16.gmra.mrb[0].mxu0 %v379
        %v737 = vpop.f32.mrb[0].mxu0
        %v738 = vadd.f32 %v426, %v737
        %v739 = vpop.f32.mrb[0].mxu0
        %v740 = vadd.f32 %v430, %v739
        %v741 = vpop.f32.mrb[0].mxu0
        %v742 = vadd.f32 %v426, %v741
        %v743 = vpop.f32.mrb[0].mxu0
        %v744 = vadd.f32 %v430, %v743
        %745 = vmatprep.mubr.bf16.mxu0 %v382
        %746 = vmatmul.mubr.bf16.gmra.mrb[0].mxu0 %v381
        %v747 = vpop.f32.mrb[0].mxu0
        %v748 = vadd.f32 %v426, %v747
        %v749 = vpop.f32.mrb[0].mxu0
        %v750 = vadd.f32 %v430, %v749
        %v751 = vpop.f32.mrb[0].mxu0
        %v752 = vadd.f32 %v426, %v751
        %v753 = vpop.f32.mrb[0].mxu0
        %v754 = vadd.f32 %v430, %v753
        %755 = vmatprep.mubr.bf16.mxu0 %v384
        %756 = vmatmul.mubr.bf16.gmra.mrb[0].mxu0 %v383
        %v757 = vpop.f32.mrb[0].mxu0
        %v758 = vadd.f32 %v426, %v757
        %v759 = vpop.f32.mrb[0].mxu0
        %v760 = vadd.f32 %v430, %v759
        %v761 = vpop.f32.mrb[0].mxu0
        %v762 = vadd.f32 %v426, %v761
        %v763 = vpop.f32.mrb[0].mxu0
        %v764 = vadd.f32 %v430, %v763
        %765 = vmatprep.mubr.bf16.mxu0 %v386
        %766 = vmatmul.mubr.bf16.gmra.mrb[0].mxu0 %v385
        %v767 = vpop.f32.mrb[0].mxu0
        %v768 = vadd.f32 %v426, %v767
        %v769 = vpop.f32.mrb[0].mxu0
        %v770 = vadd.f32 %v430, %v769
        %v771 = vpop.f32.mrb[0].mxu0
        %v772 = vadd.f32 %v426, %v771
        %v773 = vpop.f32.mrb[0].mxu0
        %v774 = vadd.f32 %v430, %v773
        %775 = vmatprep.mubr.bf16.mxu0 %v388
        %776 = vmatmul.mubr.bf16.gmra.mrb[0].mxu0 %v387
        %v777 = vpop.f32.mrb[0].mxu0
        %v778 = vadd.f32 %v426, %v777
        %v779 = vpop.f32.mrb[0].mxu0
        %v780 = vadd.f32 %v430, %v779
        %v781 = vpop.f32.mrb[0].mxu0
        %v782 = vadd.f32 %v426, %v781
        %v783 = vpop.f32.mrb[0].mxu0
        %v784 = vadd.f32 %v430, %v783
        %785 = vdwg.mxu0
        %v786 = vpack.c.bf16 %v632, %v628
        %v787 = vpack.c.bf16 %v642, %v638
        %v788 = vpack.c.bf16 %v652, %v648
        %v789 = vpack.c.bf16 %v662, %v658
        %v790 = vpack.c.bf16 %v672, %v668
        %v791 = vpack.c.bf16 %v682, %v678
        %v792 = vpack.c.bf16 %v692, %v688
        %v793 = vpack.c.bf16 %v702, %v698
        %v794 = vpack.c.bf16 %v712, %v708
        %v795 = vpack.c.bf16 %v722, %v718
        %v796 = vpack.c.bf16 %v732, %v728
        %v797 = vpack.c.bf16 %v742, %v738
        %v798 = vpack.c.bf16 %v752, %v748
        %v799 = vpack.c.bf16 %v762, %v758
        %v800 = vpack.c.bf16 %v772, %v768
        %v801 = vpack.c.bf16 %v782, %v778
        %v802 = vtanh.bf16.pop %v786
        %v803 = vtanh.bf16.pop %v787
        %v804 = vtanh.bf16.pop %v788
        %v805 = vtanh.bf16.pop %v789
        %v806 = vtanh.bf16.pop %v790
        %v807 = vtanh.bf16.pop %v791
        %v808 = vtanh.bf16.pop %v792
        %v809 = vtanh.bf16.pop %v793
        %v810 = vtanh.bf16.pop %v794
        %v811 = vtanh.bf16.pop %v795
        %v812 = vtanh.bf16.pop %v796
        %v813 = vtanh.bf16.pop %v797
        %v814 = vtanh.bf16.pop %v798
        %v815 = vtanh.bf16.pop %v799
        %v816 = vtanh.bf16.pop %v800
        %v817 = vtanh.bf16.pop %v801
        %v818 = vpack.c.bf16 %v634, %v630
        %v819 = vpack.c.bf16 %v644, %v640
        %v820 = vpack.c.bf16 %v654, %v650
        %v821 = vpack.c.bf16 %v664, %v660
        %v822 = vpack.c.bf16 %v674, %v670
        %v823 = vpack.c.bf16 %v684, %v680
        %v824 = vpack.c.bf16 %v694, %v690
        %v825 = vpack.c.bf16 %v704, %v700
        %v826 = vpack.c.bf16 %v714, %v710
        %v827 = vpack.c.bf16 %v724, %v720
        %v828 = vpack.c.bf16 %v734, %v730
        %v829 = vpack.c.bf16 %v744, %v740
        %v830 = vpack.c.bf16 %v754, %v750
        %v831 = vpack.c.bf16 %v764, %v760
        %v832 = vpack.c.bf16 %v774, %v770
        %v833 = vpack.c.bf16 %v784, %v780
        %v834 = vxor.u32 %v818, 2147516416
        %v835 = vxor.u32 %v819, 2147516416
        %v836 = vxor.u32 %v820, 2147516416
        %v837 = vxor.u32 %v821, 2147516416
        %v838 = vxor.u32 %v822, 2147516416
        %v839 = vxor.u32 %v823, 2147516416
        %v840 = vxor.u32 %v824, 2147516416
        %v841 = vxor.u32 %v825, 2147516416
        %v842 = vxor.u32 %v826, 2147516416
        %v843 = vxor.u32 %v827, 2147516416
        %v844 = vxor.u32 %v828, 2147516416
        %v845 = vxor.u32 %v829, 2147516416
        %v846 = vxor.u32 %v830, 2147516416
        %v847 = vxor.u32 %v831, 2147516416
        %v848 = vxor.u32 %v832, 2147516416
        %v849 = vxor.u32 %v833, 2147516416
        %v851 = vmul.bf16 %v834, 1069105081
        %v852 = vpow.bf16.pop %v851
        %v854 = vmul.bf16 %v835, 1069105081
        %v855 = vpow.bf16.pop %v854
        %v857 = vmul.bf16 %v836, 1069105081
        %v858 = vpow.bf16.pop %v857
        %v860 = vmul.bf16 %v837, 1069105081
        %v861 = vpow.bf16.pop %v860
        %v863 = vmul.bf16 %v838, 1069105081
        %v864 = vpow.bf16.pop %v863
        %v866 = vmul.bf16 %v839, 1069105081
        %v867 = vpow.bf16.pop %v866
        %v869 = vmul.bf16 %v840, 1069105081
        %v870 = vpow.bf16.pop %v869
        %v872 = vmul.bf16 %v841, 1069105081
        %v873 = vpow.bf16.pop %v872
        %v875 = vmul.bf16 %v842, 1069105081
        %v876 = vpow.bf16.pop %v875
        %v878 = vmul.bf16 %v843, 1069105081
        %v879 = vpow.bf16.pop %v878
        %v881 = vmul.bf16 %v844, 1069105081
        %v882 = vpow.bf16.pop %v881
        %v884 = vmul.bf16 %v845, 1069105081
        %v885 = vpow.bf16.pop %v884
        %v887 = vmul.bf16 %v846, 1069105081
        %v888 = vpow.bf16.pop %v887
        %v890 = vmul.bf16 %v847, 1069105081
        %v891 = vpow.bf16.pop %v890
        %v893 = vmul.bf16 %v848, 1069105081
        %v894 = vpow.bf16.pop %v893
        %v896 = vmul.bf16 %v849, 1069105081
        %v897 = vpow.bf16.pop %v896
        %v898 = vadd.bf16 %v852, 1065369472
        %v899 = vadd.bf16 %v855, 1065369472
        %v900 = vadd.bf16 %v858, 1065369472
        %v901 = vadd.bf16 %v861, 1065369472
        %v902 = vadd.bf16 %v864, 1065369472
        %v903 = vadd.bf16 %v867, 1065369472
        %v904 = vadd.bf16 %v870, 1065369472
        %v905 = vadd.bf16 %v873, 1065369472
        %v906 = vadd.bf16 %v876, 1065369472
        %v907 = vadd.bf16 %v879, 1065369472
        %v908 = vadd.bf16 %v882, 1065369472
        %v909 = vadd.bf16 %v885, 1065369472
        %v910 = vadd.bf16 %v888, 1065369472
        %v911 = vadd.bf16 %v891, 1065369472
        %v912 = vadd.bf16 %v894, 1065369472
        %v913 = vadd.bf16 %v897, 1065369472
        %v914 = vrcp.bf16.pop %v898
        %v915 = vmul.bf16 1065369472, %v914
        %v916 = vrcp.bf16.pop %v899
        %v917 = vmul.bf16 1065369472, %v916
        %v918 = vrcp.bf16.pop %v900
        %v919 = vmul.bf16 1065369472, %v918
        %v920 = vrcp.bf16.pop %v901
        %v921 = vmul.bf16 1065369472, %v920
        %v922 = vrcp.bf16.pop %v902
        %v923 = vmul.bf16 1065369472, %v922
        %v924 = vrcp.bf16.pop %v903
        %v925 = vmul.bf16 1065369472, %v924
        %v926 = vrcp.bf16.pop %v904
        %v927 = vmul.bf16 1065369472, %v926
        %v928 = vrcp.bf16.pop %v905
        %v929 = vmul.bf16 1065369472, %v928
        %v930 = vrcp.bf16.pop %v906
        %v931 = vmul.bf16 1065369472, %v930
        %v932 = vrcp.bf16.pop %v907
        %v933 = vmul.bf16 1065369472, %v932
        %v934 = vrcp.bf16.pop %v908
        %v935 = vmul.bf16 1065369472, %v934
        %v936 = vrcp.bf16.pop %v909
        %v937 = vmul.bf16 1065369472, %v936
        %v938 = vrcp.bf16.pop %v910
        %v939 = vmul.bf16 1065369472, %v938
        %v940 = vrcp.bf16.pop %v911
        %v941 = vmul.bf16 1065369472, %v940
        %v942 = vrcp.bf16.pop %v912
        %v943 = vmul.bf16 1065369472, %v942
        %v944 = vrcp.bf16.pop %v913
        %v945 = vmul.bf16 1065369472, %v944
        %v946 = vmul.bf16 %v802, %v915
        %v947 = vmul.bf16 %v803, %v917
        %v948 = vmul.bf16 %v804, %v919
        %v949 = vmul.bf16 %v805, %v921
        %v950 = vmul.bf16 %v806, %v923
        %v951 = vmul.bf16 %v807, %v925
        %v952 = vmul.bf16 %v808, %v927
        %v953 = vmul.bf16 %v809, %v929
        %v954 = vmul.bf16 %v810, %v931
        %v955 = vmul.bf16 %v811, %v933
        %v956 = vmul.bf16 %v812, %v935
        %v957 = vmul.bf16 %v813, %v937
        %v958 = vmul.bf16 %v814, %v939
        %v959 = vmul.bf16 %v815, %v941
        %v960 = vmul.bf16 %v816, %v943
        %v961 = vmul.bf16 %v817, %v945
        %v962 = vld [vmem:[#allocation7] sm:$0xf]
        %v963 = vld [vmem:[#allocation7 + $0x4] sm:$0xf]
        %v964 = vld [vmem:[#allocation7 + $0x8] sm:$0xf]
        %v965 = vld [vmem:[#allocation7 + $0xc] sm:$0xf]
        %v966 = vld [vmem:[#allocation7 + $0x10] sm:$0xf]
        %v967 = vld [vmem:[#allocation7 + $0x14] sm:$0xf]
        %v968 = vld [vmem:[#allocation7 + $0x18] sm:$0xf]
        %v969 = vld [vmem:[#allocation7 + $0x1c] sm:$0xf]
        %v970 = vld [vmem:[#allocation7 + $0x20] sm:$0xf]
        %v971 = vld [vmem:[#allocation7 + $0x24] sm:$0xf]
        %v972 = vld [vmem:[#allocation7 + $0x28] sm:$0xf]
        %v973 = vld [vmem:[#allocation7 + $0x2c] sm:$0xf]
        %v974 = vld [vmem:[#allocation7 + $0x30] sm:$0xf]
        %v975 = vld [vmem:[#allocation7 + $0x34] sm:$0xf]
        %v976 = vld [vmem:[#allocation7 + $0x38] sm:$0xf]
        %v977 = vld [vmem:[#allocation7 + $0x3c] sm:$0xf]
        %v978 = vld [vmem:[%s4] sm:$0x1]
        %v980 = vlaneseq
        %v981 = vshrl.u32 %v980, 7
        %v982 = vsub.s32 0, %v981
        %v983 = vrot.slane %v978, %v982
        %v1001 = vunpack.c.l.b16 %v962
        %v1002 = vunpack.c.l.b16 %v963
        %v1003 = vunpack.c.l.b16 %v964
        %v1004 = vunpack.c.l.b16 %v965
        %v1005 = vunpack.c.l.b16 %v966
        %v1006 = vunpack.c.l.b16 %v967
        %v1007 = vunpack.c.l.b16 %v968
        %v1008 = vunpack.c.l.b16 %v969
        %v1009 = vunpack.c.l.b16 %v970
        %v1010 = vunpack.c.l.b16 %v971
        %v1011 = vunpack.c.l.b16 %v972
        %v1012 = vunpack.c.l.b16 %v973
        %v1013 = vunpack.c.l.b16 %v974
        %v1014 = vunpack.c.l.b16 %v975
        %v1015 = vunpack.c.l.b16 %v976
        %v1016 = vunpack.c.l.b16 %v977
        %v1017 = vpack.c.b16 %v1002, %v1001
        %v1018 = vpack.c.b16 %v1004, %v1003
        %v1019 = vpack.c.b16 %v1006, %v1005
        %v1020 = vpack.c.b16 %v1008, %v1007
        %v1021 = vpack.c.b16 %v1010, %v1009
        %v1022 = vpack.c.b16 %v1012, %v1011
        %v1023 = vpack.c.b16 %v1014, %v1013
        %v1024 = vpack.c.b16 %v1016, %v1015
        %1033 = vmatprep.subr.bf16.mxu0 0
        %1034 = vmatpush1.bf16.msra.mxu0 %v1017
        %1035 = vmatprep.subr.bf16.mxu0 0
        %1036 = vmatpush1.bf16.msra.mxu0 %v1018
        %1037 = vmatprep.subr.bf16.mxu0 0
        %1038 = vmatpush1.bf16.msra.mxu0 %v1019
        %1039 = vmatprep.subr.bf16.mxu0 0
        %1040 = vmatpush1.bf16.msra.mxu0 %v1020
        %1041 = vmatprep.subr.bf16.mxu0 0
        %1042 = vmatpush1.bf16.msra.mxu0 %v1021
        %1043 = vmatprep.subr.bf16.mxu0 0
        %1044 = vmatpush1.bf16.msra.mxu0 %v1022
        %1045 = vmatprep.subr.bf16.mxu0 0
        %1046 = vmatpush1.bf16.msra.mxu0 %v1023
        %1047 = vmatprep.subr.bf16.mxu0 0
        %1048 = vmatpush1.bf16.msra.mxu0 %v1024
        %1049 = vmatprep.subr.bf16.mxu0 0
        %1050 = vmatpush1.bf16.msra.mxu0 0
        %1051 = vmatprep.subr.bf16.mxu0 0
        %1052 = vmatpush1.bf16.msra.mxu0 0
        %1053 = vmatprep.subr.bf16.mxu0 0
        %1054 = vmatpush1.bf16.msra.mxu0 0
        %1055 = vmatprep.subr.bf16.mxu0 0
        %1056 = vmatpush1.bf16.msra.mxu0 0
        %1057 = vmatprep.subr.bf16.mxu0 0
        %1058 = vmatpush1.bf16.msra.mxu0 0
        %1059 = vmatprep.subr.bf16.mxu0 0
        %1060 = vmatpush1.bf16.msra.mxu0 0
        %1061 = vmatprep.subr.bf16.mxu0 0
        %1062 = vmatpush1.bf16.msra.mxu0 0
        %1063 = vmatprep.subr.bf16.mxu0 0
        %1064 = vmatpush1.bf16.msra.mxu0 0
        %1065 = vmatprep.mubr.bf16.mxu0 0
        %1066 = vmatmul.mubr.bf16.gmra.mrb[0].mxu0 %v946
        %v1067 = vpop.f32.mrb[0].mxu0
        %v1068 = vadd.f32 %v983, %v1067
        %v1069 = vpop.f32.mrb[0].mxu0
        %v1070 = vpop.f32.mrb[0].mxu0
        %v1071 = vadd.f32 %v983, %v1070
        %v1072 = vpop.f32.mrb[0].mxu0
        %1073 = vmatprep.mubr.bf16.mxu0 0
        %1074 = vmatmul.mubr.bf16.gmra.mrb[0].mxu0 %v947
        %v1075 = vpop.f32.mrb[0].mxu0
        %v1076 = vadd.f32 %v983, %v1075
        %v1077 = vpop.f32.mrb[0].mxu0
        %v1078 = vpop.f32.mrb[0].mxu0
        %v1079 = vadd.f32 %v983, %v1078
        %v1080 = vpop.f32.mrb[0].mxu0
        %1081 = vmatprep.mubr.bf16.mxu0 0
        %1082 = vmatmul.mubr.bf16.gmra.mrb[0].mxu0 %v948
        %v1083 = vpop.f32.mrb[0].mxu0
        %v1084 = vadd.f32 %v983, %v1083
        %v1085 = vpop.f32.mrb[0].mxu0
        %v1086 = vpop.f32.mrb[0].mxu0
        %v1087 = vadd.f32 %v983, %v1086
        %v1088 = vpop.f32.mrb[0].mxu0
        %1089 = vmatprep.mubr.bf16.mxu0 0
        %1090 = vmatmul.mubr.bf16.gmra.mrb[0].mxu0 %v949
        %v1091 = vpop.f32.mrb[0].mxu0
        %v1092 = vadd.f32 %v983, %v1091
        %v1093 = vpop.f32.mrb[0].mxu0
        %v1094 = vpop.f32.mrb[0].mxu0
        %v1095 = vadd.f32 %v983, %v1094
        %v1096 = vpop.f32.mrb[0].mxu0
        %1097 = vmatprep.mubr.bf16.mxu0 0
        %1098 = vmatmul.mubr.bf16.gmra.mrb[0].mxu0 %v950
        %v1099 = vpop.f32.mrb[0].mxu0
        %v1100 = vadd.f32 %v983, %v1099
        %v1101 = vpop.f32.mrb[0].mxu0
        %v1102 = vpop.f32.mrb[0].mxu0
        %v1103 = vadd.f32 %v983, %v1102
        %v1104 = vpop.f32.mrb[0].mxu0
        %1105 = vmatprep.mubr.bf16.mxu0 0
        %1106 = vmatmul.mubr.bf16.gmra.mrb[0].mxu0 %v951
        %v1107 = vpop.f32.mrb[0].mxu0
        %v1108 = vadd.f32 %v983, %v1107
        %v1109 = vpop.f32.mrb[0].mxu0
        %v1110 = vpop.f32.mrb[0].mxu0
        %v1111 = vadd.f32 %v983, %v1110
        %v1112 = vpop.f32.mrb[0].mxu0
        %1113 = vmatprep.mubr.bf16.mxu0 0
        %1114 = vmatmul.mubr.bf16.gmra.mrb[0].mxu0 %v952
        %v1115 = vpop.f32.mrb[0].mxu0
        %v1116 = vadd.f32 %v983, %v1115
        %v1117 = vpop.f32.mrb[0].mxu0
        %v1118 = vpop.f32.mrb[0].mxu0
        %v1119 = vadd.f32 %v983, %v1118
        %v1120 = vpop.f32.mrb[0].mxu0
        %1121 = vmatprep.mubr.bf16.mxu0 0
        %1122 = vmatmul.mubr.bf16.gmra.mrb[0].mxu0 %v953
        %v1123 = vpop.f32.mrb[0].mxu0
        %v1124 = vadd.f32 %v983, %v1123
        %v1125 = vpop.f32.mrb[0].mxu0
        %v1126 = vpop.f32.mrb[0].mxu0
        %v1127 = vadd.f32 %v983, %v1126
        %v1128 = vpop.f32.mrb[0].mxu0
        %1129 = vmatprep.mubr.bf16.mxu0 0
        %1130 = vmatmul.mubr.bf16.gmra.mrb[0].mxu0 %v954
        %v1131 = vpop.f32.mrb[0].mxu0
        %v1132 = vadd.f32 %v983, %v1131
        %v1133 = vpop.f32.mrb[0].mxu0
        %v1134 = vpop.f32.mrb[0].mxu0
        %v1135 = vadd.f32 %v983, %v1134
        %v1136 = vpop.f32.mrb[0].mxu0
        %1137 = vmatprep.mubr.bf16.mxu0 0
        %1138 = vmatmul.mubr.bf16.gmra.mrb[0].mxu0 %v955
        %v1139 = vpop.f32.mrb[0].mxu0
        %v1140 = vadd.f32 %v983, %v1139
        %v1141 = vpop.f32.mrb[0].mxu0
        %v1142 = vpop.f32.mrb[0].mxu0
        %v1143 = vadd.f32 %v983, %v1142
        %v1144 = vpop.f32.mrb[0].mxu0
        %1145 = vmatprep.mubr.bf16.mxu0 0
        %1146 = vmatmul.mubr.bf16.gmra.mrb[0].mxu0 %v956
        %v1147 = vpop.f32.mrb[0].mxu0
        %v1148 = vadd.f32 %v983, %v1147
        %v1149 = vpop.f32.mrb[0].mxu0
        %v1150 = vpop.f32.mrb[0].mxu0
        %v1151 = vadd.f32 %v983, %v1150
        %v1152 = vpop.f32.mrb[0].mxu0
        %1153 = vmatprep.mubr.bf16.mxu0 0
        %1154 = vmatmul.mubr.bf16.gmra.mrb[0].mxu0 %v957
        %v1155 = vpop.f32.mrb[0].mxu0
        %v1156 = vadd.f32 %v983, %v1155
        %v1157 = vpop.f32.mrb[0].mxu0
        %v1158 = vpop.f32.mrb[0].mxu0
        %v1159 = vadd.f32 %v983, %v1158
        %v1160 = vpop.f32.mrb[0].mxu0
        %1161 = vmatprep.mubr.bf16.mxu0 0
        %1162 = vmatmul.mubr.bf16.gmra.mrb[0].mxu0 %v958
        %v1163 = vpop.f32.mrb[0].mxu0
        %v1164 = vadd.f32 %v983, %v1163
        %v1165 = vpop.f32.mrb[0].mxu0
        %v1166 = vpop.f32.mrb[0].mxu0
        %v1167 = vadd.f32 %v983, %v1166
        %v1168 = vpop.f32.mrb[0].mxu0
        %1169 = vmatprep.mubr.bf16.mxu0 0
        %1170 = vmatmul.mubr.bf16.gmra.mrb[0].mxu0 %v959
        %v1171 = vpop.f32.mrb[0].mxu0
        %v1172 = vadd.f32 %v983, %v1171
        %v1173 = vpop.f32.mrb[0].mxu0
        %v1174 = vpop.f32.mrb[0].mxu0
        %v1175 = vadd.f32 %v983, %v1174
        %v1176 = vpop.f32.mrb[0].mxu0
        %1177 = vmatprep.mubr.bf16.mxu0 0
        %1178 = vmatmul.mubr.bf16.gmra.mrb[0].mxu0 %v960
        %v1179 = vpop.f32.mrb[0].mxu0
        %v1180 = vadd.f32 %v983, %v1179
        %v1181 = vpop.f32.mrb[0].mxu0
        %v1182 = vpop.f32.mrb[0].mxu0
        %v1183 = vadd.f32 %v983, %v1182
        %v1184 = vpop.f32.mrb[0].mxu0
        %1185 = vmatprep.mubr.bf16.mxu0 0
        %1186 = vmatmul.mubr.bf16.gmra.mrb[0].mxu0 %v961
        %v1187 = vpop.f32.mrb[0].mxu0
        %v1188 = vadd.f32 %v983, %v1187
        %v1189 = vpop.f32.mrb[0].mxu0
        %v1190 = vpop.f32.mrb[0].mxu0
        %v1191 = vadd.f32 %v983, %v1190
        %v1192 = vpop.f32.mrb[0].mxu0
        %1193 = vdwg.mxu0
        %1194 = vxpose.xlu0.b32.start [1/16] %v1068, 128
        %1195 = vxpose.xlu0.b32.cont [2/16] %v1071, 128
        %1196 = vxpose.xlu0.b32.cont [3/16] %v1076, 128
        %1197 = vxpose.xlu0.b32.cont [4/16] %v1079, 128
        %1198 = vxpose.xlu0.b32.cont [5/16] %v1084, 128
        %1199 = vxpose.xlu0.b32.cont [6/16] %v1087, 128
        %1200 = vxpose.xlu0.b32.cont [7/16] %v1092, 128
        %1201 = vxpose.xlu0.b32.cont [8/16] %v1095, 128
        %1202 = vxpose.xlu0.b32.cont [9/16] %v1100, 128
        %1203 = vxpose.xlu0.b32.cont [10/16] %v1103, 128
        %1204 = vxpose.xlu0.b32.cont [11/16] %v1108, 128
        %1205 = vxpose.xlu0.b32.cont [12/16] %v1111, 128
        %1206 = vxpose.xlu0.b32.cont [13/16] %v1116, 128
        %1207 = vxpose.xlu0.b32.cont [14/16] %v1119, 128
        %1208 = vxpose.xlu0.b32.cont [15/16] %v1124, 128
        %1209 = vxpose.xlu0.b32.end [16/16] %v1127, 128
        %v1210 = vpop.trf.xlu0
        %v1211 = vpop.trf.xlu0
        %v1212 = vpop.trf.xlu0
        %v1213 = vpop.trf.xlu0
        %v1214 = vpop.trf.xlu0
        %v1215 = vpop.trf.xlu0
        %v1216 = vpop.trf.xlu0
        %v1217 = vpop.trf.xlu0
        %v1218 = vpop.trf.xlu0
        %v1219 = vpop.trf.xlu0
        %v1220 = vpop.trf.xlu0
        %v1221 = vpop.trf.xlu0
        %v1222 = vpop.trf.xlu0
        %v1223 = vpop.trf.xlu0
        %v1224 = vpop.trf.xlu0
        %v1225 = vpop.trf.xlu0
        %1226 = vxpose.xlu0.b32.start [1/16] %v1132, 128
        %1227 = vxpose.xlu0.b32.cont [2/16] %v1135, 128
        %1228 = vxpose.xlu0.b32.cont [3/16] %v1140, 128
        %1229 = vxpose.xlu0.b32.cont [4/16] %v1143, 128
        %1230 = vxpose.xlu0.b32.cont [5/16] %v1148, 128
        %1231 = vxpose.xlu0.b32.cont [6/16] %v1151, 128
        %1232 = vxpose.xlu0.b32.cont [7/16] %v1156, 128
        %1233 = vxpose.xlu0.b32.cont [8/16] %v1159, 128
        %1234 = vxpose.xlu0.b32.cont [9/16] %v1164, 128
        %1235 = vxpose.xlu0.b32.cont [10/16] %v1167, 128
        %1236 = vxpose.xlu0.b32.cont [11/16] %v1172, 128
        %1237 = vxpose.xlu0.b32.cont [12/16] %v1175, 128
        %1238 = vxpose.xlu0.b32.cont [13/16] %v1180, 128
        %1239 = vxpose.xlu0.b32.cont [14/16] %v1183, 128
        %1240 = vxpose.xlu0.b32.cont [15/16] %v1188, 128
        %1241 = vxpose.xlu0.b32.end [16/16] %v1191, 128
        %v1242 = vpop.trf.xlu0
        %v1243 = vpop.trf.xlu0
        %v1244 = vpop.trf.xlu0
        %v1245 = vpop.trf.xlu0
        %v1246 = vpop.trf.xlu0
        %v1247 = vpop.trf.xlu0
        %v1248 = vpop.trf.xlu0
        %v1249 = vpop.trf.xlu0
        %v1250 = vpop.trf.xlu0
        %v1251 = vpop.trf.xlu0
        %v1252 = vpop.trf.xlu0
        %v1253 = vpop.trf.xlu0
        %v1254 = vpop.trf.xlu0
        %v1255 = vpop.trf.xlu0
        %v1256 = vpop.trf.xlu0
        %v1257 = vpop.trf.xlu0
        %1258 = vst [vmem:[%s279] sm:$0xff] %v1210
        %1259 = vst [vmem:[%s279 + $0x8] sm:$0xff] %v1242
        %s1260 = sand.u32 %s141, 1
        %s1261 = scalar_lea.sflag [#allocation4], %s1260
        %s1262 = sand.u32 %s141, 1
        %s1263 = smul.addr %s1262, 16
        %s1264 = scalar_lea.vmem [#allocation8], %s1263
        // Predicated region
        $region53: #{tpu_custom_call.1} parent=39 // pred_check
          %p1265 = pneg %p151
        $region54: #{tpu_custom_call.1} parent=39 // pred_check_branch
          %1267 = sbr.rel (%p1265) target = $region56
        $region55: #{tpu_custom_call.1} parent=39 // pred_region
          %s1268 = smul.u32 2, %s23
          %s1269 = ssub.s32 3, %s1268
          %p1270 = scmp.lt.s32.totalorder %s1269, 2
          %s1271 = scalar_select %p1270, %s1269, 2
          %s1272 = smul.u32 128, %s1271
          %s1274 = ssub.s32 256, %s1272
          %1275 = vsyncadd %s1261, %s1274
          %p1276 = scmp.ne.s32.totalorder 0, %s1272
          %s1277 = smul.addr %s1268, 128
          %s1278 = scalar_lea.hbm %s5, %s1277
          %s1279 = smul.u32 %s1271, 8
          %s1280 = sshll.u32 %s1279, 4
          %s1281 = sshll.u32 %s1264, 4
          %s1282 = int_to_ptr.vmem [resolvable:$true] %s1281
          %1284 = dma.vmem_to_hbm [thread:$0]  (%p1276), %s1282, %s1280, %s1278, %s1261
        $region56: #{tpu_custom_call.1} parent=39 // pred_fallthru
          _
      $region40: #{tpu_custom_call.1} parent=5 // pred_fallthru
        _
      %p1285 = scmp.le.s32.totalorder 2, %s18
      // Predicated region
      $region57: #{tpu_custom_call.1} parent=5 // pred_check
        %p1286 = pneg %p1285
      $region58: #{tpu_custom_call.1} parent=5 // pred_check_branch
        %1288 = sbr.rel (%p1286) target = $region60
      $region59: #{tpu_custom_call.1} parent=5 // pred_region
        %s1289 = ssub.s32 %s18, 2
        // Predicated region
        $region61: #{tpu_custom_call.1} parent=59 // pred_check
          %p1290 = pneg %p157
        $region62: #{tpu_custom_call.1} parent=59 // pred_check_branch
          %1292 = sbr.rel (%p1290) target = $region64
        $region63: #{tpu_custom_call.1} parent=59 // pred_region
          %s1293 = sand.u32 %s142, 1
          %s1294 = scalar_lea.sflag [#allocation4], %s1293
          %s1295 = sand.u32 %s142, 1
          %s1296 = smul.addr %s1295, 16
          %s1297 = scalar_lea.vmem [#allocation8], %s1296
          %1298 = dma.done %s1294, 256
        $region64: #{tpu_custom_call.1} parent=59 // pred_fallthru
          _
      $region60: #{tpu_custom_call.1} parent=5 // pred_fallthru
        _
    $region6: #{tpu_custom_call.1} parent=1 // loop_footer
      %s22 = sadd.s32 1, %s18
    $region7: #{tpu_custom_call.1} parent=1 // loop_footer_branch
      %17 = sbr.rel target = $region3
    $region8: #{tpu_custom_call.1} parent=1 // loop_exit
      _
    %1299 = vsyncpa [#allocation3], 1
    %s1300 = scalar_lea.sflag [#allocation3], 1
    %1301 = vsyncpa %s1300, 1
    %1302 = vsyncpa [#allocation6], 1
    %1303 = vsyncpa [#allocation4], 1
    %s1304 = scalar_lea.sflag [#allocation4], 1
    %1305 = vsyncpa %s1304, 1

</llo_original>
